<compile_context>
chip_gen: v7x
topology: tpu7x:2x2x1
jax: 0.10.0
libtpu: 0.0.40
codegen_flags: <defaults>
</compile_context>

<pallas_src>
import functools

import jax
import jax.numpy as jnp
from jax import lax
from jax.experimental import pallas as pl
from jax.experimental.pallas import tpu as pltpu

_LANES = 128
_SUBLANES = 8
_MAX_BLOCK_ROWS = 4096  # (4096, 128) f32 = 2 MiB per input per pipeline buffer.


def _cdiv(a, b):
    return -(-a // b)


def _round_up(x, m):
    return ((x + m - 1) // m) * m


def _elementwise_focal_loss(p, t, *, gamma, eps, label_smoothing,
                            pos_weight, neg_weight):
    """Elementwise binary focal loss on f32 tiles (mirrors BinaryFocalLoss.forward)."""
    q = 1.0 - p
    pc = jnp.clip(p, eps, 1.0)
    qc = jnp.clip(q, eps, 1.0)
    log_p = jnp.log(pc)
    log_q = jnp.log(qc)

    if gamma == 2.0:
        # Fast path: squaring rides the 4-wide VPU instead of the single EUP slot.
        pow_q = qc * qc
        pow_p = pc * pc
    elif float(gamma) == float(int(gamma)) and int(gamma) >= 0:
        pow_q = lax.integer_pow(qc, int(gamma))
        pow_p = lax.integer_pow(pc, int(gamma))
    else:
        # General gamma: reuse the logs we already computed (no hidden extra logs).
        pow_q = jnp.exp(gamma * log_q)
        pow_p = jnp.exp(gamma * log_p)

    pos_loss = -pow_q * log_p
    if pos_weight is not None:
        pos_loss = pos_loss * pos_weight
    neg_loss = -pow_p * log_q
    if neg_weight is not None:
        neg_loss = neg_loss * neg_weight

    if label_smoothing is None:
        loss = jnp.where(t != 0.0, pos_loss, neg_loss)
    else:
        ts = (1.0 - label_smoothing) * t + label_smoothing * 0.5
        # ts*pos + (1-ts)*neg == neg + ts*(pos - neg)  (one fewer VPU op)
        loss = neg_loss + ts * (pos_loss - neg_loss)
    return loss


def _focal_loss_reduce_kernel(p_ref, t_ref, out_ref, acc_ref, *,
                              gamma, eps, label_smoothing, pos_weight,
                              neg_weight, inv_divisor, block_rows,
                              blocks_per_core, n_elems, may_have_partial):
    c = pl.program_id(0)  # core-split ("parallel") axis
    i = pl.program_id(1)  # reduction ("arbitrary") axis

    @pl.when(i == 0)
    def _():
        acc_ref[...] = jnp.zeros_like(acc_ref)

    p = p_ref[...].astype(jnp.float32)
    t = t_ref[...].astype(jnp.float32)
    loss = _elementwise_focal_loss(
        p, t, gamma=gamma, eps=eps, label_smoothing=label_smoothing,
        pos_weight=pos_weight, neg_weight=neg_weight)

    if not may_have_partial:
        # Statically known: every block is fully valid -> no mask work at all.
        acc_ref[...] = acc_ref[...] + jnp.sum(loss, axis=0, keepdims=True)
    else:
        block_elems = block_rows * _LANES
        # Valid elements starting at this block's (unclamped) origin; negative
        # for the clamped overflow block of the last core.
        global_blk = c * blocks_per_core + i
        remaining = n_elems - global_blk * block_elems

        @pl.when(remaining >= block_elems)
        def _():
            # Full block: unmasked accumulate (no iota/compare/select on the VPU).
            acc_ref[...] = acc_ref[...] + jnp.sum(loss, axis=0, keepdims=True)

        @pl.when(remaining < block_elems)
        def _():
            # Tail / duplicated-overflow block: select (never multiply-by-mask)
            # so NaN/Inf from the unread garbage region cannot poison the sum.
            row = lax.broadcasted_iota(jnp.int32, loss.shape, 0)
            lane = lax.broadcasted_iota(jnp.int32, loss.shape, 1)
            flat = row * _LANES + lane
            masked = jnp.where(flat < remaining, loss, 0.0)
            acc_ref[...] = acc_ref[...] + jnp.sum(masked, axis=0, keepdims=True)

    @pl.when(i == pl.num_programs(1) - 1)
    def _():
        # Per-core lane-partials, already scaled by 1/divisor; cross-lane and
        # cross-core reduction happens in one tiny XLA sum outside the kernel.
        out_ref[0] = acc_ref[...] * inv_divisor


def binary_focal_loss(inputs, targets, *, gamma=2.0, eps=1e-07,
                      pos_weight=None, neg_weight=None,
                      label_smoothing=0.1, reduction="mean",
                      narrow_targets=True, max_block_rows=_MAX_BLOCK_ROWS):
    """Pallas implementation of BinaryFocalLoss.forward (reduction in-kernel)."""
    # TODO(synk): reduction='none' (elementwise output) not implemented in-kernel.
    assert reduction in ("mean", "sum")
    assert inputs.shape == targets.shape

    n_elems = 1
    for d in inputs.shape:
        n_elems *= d
    assert 0 < n_elems < 2**31  # in-kernel index math is int32

    # Stream targets at half width: exact for hard 0/1 labels (the documented
    # use). Disable via narrow_targets=False if soft targets are ever passed.
    if narrow_targets and targets.dtype == jnp.float32:
        targets = targets.astype(jnp.bfloat16)

    rows = _cdiv(n_elems, _LANES)
    if rows > max_block_rows:
        block_rows = _round_up(max_block_rows, _SUBLANES)
    else:
        block_rows = rows  # single block == full array dim (no (8,128) issue)
    total_blocks = _cdiv(rows, block_rows)
    num_cores = 2 if total_blocks >= 2 else 1  # megacore split; harmless on 1-TC chips
    blocks_per_core = _cdiv(total_blocks, num_cores)
    may_have_partial = (n_elems != total_blocks * block_rows * _LANES
                        or num_cores * blocks_per_core != total_blocks)

    # Flatten to a lane-dense (rows, 128) slab. Only pad to the next multiple
    # of 128 (<= 127 elements); partial trailing BLOCKS are masked in-kernel,
    # so there is no full-array pad copy in HBM.
    p_flat = inputs.reshape(-1)
    t_flat = targets.reshape(-1)
    pad = rows * _LANES - n_elems
    if pad:
        p_flat = jnp.pad(p_flat, (0, pad))
        t_flat = jnp.pad(t_flat, (0, pad))
    p2 = p_flat.reshape(rows, _LANES)
    t2 = t_flat.reshape(rows, _LANES)

    inv_divisor = 1.0 / float(n_elems) if reduction == "mean" else 1.0

    kernel = functools.partial(
        _focal_loss_reduce_kernel,
        gamma=gamma, eps=eps, label_smoothing=label_smoothing,
        pos_weight=pos_weight, neg_weight=neg_weight, inv_divisor=inv_divisor,
        block_rows=block_rows, blocks_per_core=blocks_per_core,
        n_elems=n_elems, may_have_partial=may_have_partial)

    def row_block_map(c, i):
        # Clamp so the (rare) overflow block of the last core stays in bounds;
        # its contribution is zeroed in-kernel via the `remaining` mask.
        return (jnp.minimum(c * blocks_per_core + i, total_blocks - 1), 0)

    out = pl.pallas_call(
        kernel,
        out_shape=jax.ShapeDtypeStruct((num_cores, 1, _LANES), jnp.float32),
        grid_spec=pltpu.PrefetchScalarGridSpec(
            num_scalar_prefetch=0,
            grid=(num_cores, blocks_per_core),
            in_specs=[
                pl.BlockSpec((block_rows, _LANES), row_block_map),
                pl.BlockSpec((block_rows, _LANES), row_block_map),
            ],
            out_specs=pl.BlockSpec((1, 1, _LANES), lambda c, i: (c, 0, 0)),
            scratch_shapes=[pltpu.VMEM((1, _LANES), jnp.float32)],
        ),
        compiler_params=pltpu.CompilerParams(
            dimension_semantics=("parallel", "arbitrary"),
            vmem_limit_bytes=32 * 1024 * 1024,  # safe on v5e/v6e/v7x
        ),
    )(p2, t2)

    # Tiny epilogue: sum the (num_cores, 128) per-lane partials.
    return jnp.sum(out)


def _reference_binary_focal_loss(inputs, targets, *, gamma=2.0, eps=1e-07,
                                 pos_weight=None, neg_weight=None,
                                 label_smoothing=0.1, reduction="mean"):
    p = inputs.astype(jnp.float32)
    t = targets.astype(jnp.float32)
    q = 1.0 - p
    pc = jnp.clip(p, eps, 1.0)
    qc = jnp.clip(q, eps, 1.0)
    pos_loss = -(qc ** gamma) * jnp.log(pc)
    if pos_weight is not None:
        pos_loss = pos_loss * pos_weight
    neg_loss = -(pc ** gamma) * jnp.log(qc)
    if neg_weight is not None:
        neg_loss = neg_loss * neg_weight
    if label_smoothing is None:
        loss = jnp.where(t != 0.0, pos_loss, neg_loss)
    else:
        ts = (1.0 - label_smoothing) * t + label_smoothing * 0.5
        loss = ts * pos_loss + (1.0 - ts) * neg_loss
    if reduction == "mean":
        return loss.mean(axis=-1).mean()
    return loss.sum()


if __name__ == "__main__":
    key = jax.random.PRNGKey(0)
    k1, k2, k3, k4, k5, k6 = jax.random.split(key, 6)

    # Case 1: aligned NCHW shape (2, 4, 16, 16) = 2048 elements; targets
    # already bf16 (narrow HBM streaming path, exact for hard 0/1 labels).
    x = jax.random.uniform(k1, (2, 4, 16, 16), dtype=jnp.float32)
    y = (jax.random.uniform(k2, (2, 4, 16, 16)) > 0.5).astype(jnp.bfloat16)
    loss = jax.block_until_ready(binary_focal_loss(x, y))
    ref = _reference_binary_focal_loss(x, y)
    assert jnp.allclose(loss, ref, rtol=1e-5, atol=1e-6), (loss, ref)

    # Case 2: non-multiple-of-128 shape -> masked partial block, sum reduction.
    x2 = jax.random.uniform(k3, (2, 3, 7, 5), dtype=jnp.float32)
    y2 = (jax.random.uniform(k4, (2, 3, 7, 5)) > 0.5).astype(jnp.float32)
    loss2 = jax.block_until_ready(binary_focal_loss(x2, y2, reduction="sum"))
    ref2 = _reference_binary_focal_loss(x2, y2, reduction="sum")
    assert jnp.allclose(loss2, ref2, rtol=1e-5, atol=1e-5), (loss2, ref2)

    # Case 3: small max_block_rows forces multi-block + 2-way core split +
    # clamped overflow block + masked tail, all at a tiny shape.
    x3 = jax.random.uniform(k5, (5, 7, 73), dtype=jnp.float32)
    y3 = (jax.random.uniform(k6, (5, 7, 73)) > 0.5).astype(jnp.float32)
    loss3 = jax.block_until_ready(binary_focal_loss(x3, y3, max_block_rows=8))
    ref3 = _reference_binary_focal_loss(x3, y3)
    assert jnp.allclose(loss3, ref3, rtol=1e-5, atol=1e-6), (loss3, ref3)

    print("KERNEL_OK")
</pallas_src>

<mosaic_0001>
module attributes {stable_mosaic.version = 11 : i64} {
  func.func @_focal_loss_reduce_kernel(%arg0: i32, %arg1: i32, %arg2: memref<16x128xf32, #tpu.memory_space<vmem>>, %arg3: memref<16x128xbf16, #tpu.memory_space<vmem>>, %arg4: memref<1x1x128xf32, #tpu.memory_space<vmem>>, %arg5: memref<1x128xf32, #tpu.memory_space<vmem>>) attributes {dimension_semantics = [#tpu.dimension_semantics<parallel>, #tpu.dimension_semantics<arbitrary>], iteration_bounds = array<i64: 1, 1>, scalar_prefetch = 0 : i64, scratch_operands = 1 : i64, tpu.core_type = #tpu.core_type<tc>, window_params = [{transform_indices = @transform_0, window_bounds = array<i64: 16, 128>}, {transform_indices = @transform_1, window_bounds = array<i64: 16, 128>}, {transform_indices = @transform_2, window_bounds = array<i64: 1, 1, 128>}]} {
    %c0_i32 = arith.constant 0 : i32
    %0 = arith.cmpi eq, %arg1, %c0_i32 : i32
    %1 = arith.extui %0 : i1 to i32
    %c0_i32_0 = arith.constant 0 : i32
    %2 = arith.cmpi ne, %1, %c0_i32_0 : i32
    scf.if %2 {
      %cst_19 = arith.constant 0.000000e+00 : f32
      %41 = vector.broadcast %cst_19 : f32 to vector<1x128xf32>
      %c0_20 = arith.constant 0 : index
      %c0_21 = arith.constant 0 : index
      %42 = vector.load %arg5[%c0_20, %c0_21] : memref<1x128xf32, #tpu.memory_space<vmem>>, vector<1x128xf32>
      tpu.vector_store %arg5[%c0_20, %c0_21], %41 {strides = array<i32>} : memref<1x128xf32, #tpu.memory_space<vmem>>, vector<1x128xf32>,
    } else {
    }
    %c0 = arith.constant 0 : index
    %c0_1 = arith.constant 0 : index
    %3 = vector.load %arg2[%c0, %c0_1] : memref<16x128xf32, #tpu.memory_space<vmem>>, vector<16x128xf32>
    %c0_2 = arith.constant 0 : index
    %c0_3 = arith.constant 0 : index
    %4 = vector.load %arg3[%c0_2, %c0_3] : memref<16x128xbf16, #tpu.memory_space<vmem>>, vector<16x128xbf16>
    %5 = arith.extf %4 : vector<16x128xbf16> to vector<16x128xf32>
    %cst = arith.constant 1.000000e+00 : f32
    %6 = vector.broadcast %cst : f32 to vector<16x128xf32>
    %7 = arith.subf %6, %3 : vector<16x128xf32>
    %cst_4 = arith.constant 1.000000e-07 : f32
    %cst_5 = arith.constant 1.000000e+00 : f32
    %8 = vector.broadcast %cst_4 : f32 to vector<16x128xf32>
    %9 = arith.maximumf %8, %3 : vector<16x128xf32>
    %10 = vector.broadcast %cst_5 : f32 to vector<16x128xf32>
    %11 = arith.minimumf %10, %9 : vector<16x128xf32>
    %cst_6 = arith.constant 1.000000e-07 : f32
    %cst_7 = arith.constant 1.000000e+00 : f32
    %12 = vector.broadcast %cst_6 : f32 to vector<16x128xf32>
    %13 = arith.maximumf %12, %7 : vector<16x128xf32>
    %14 = vector.broadcast %cst_7 : f32 to vector<16x128xf32>
    %15 = arith.minimumf %14, %13 : vector<16x128xf32>
    %16 = math.log %11 : vector<16x128xf32>
    %17 = math.log %15 : vector<16x128xf32>
    %18 = arith.mulf %15, %15 : vector<16x128xf32>
    %19 = arith.mulf %11, %11 : vector<16x128xf32>
    %cst_8 = arith.constant 0.000000e+00 : f32
    %20 = vector.broadcast %cst_8 : f32 to vector<16x128xf32>
    %21 = arith.subf %20, %18 : vector<16x128xf32>
    %22 = arith.mulf %21, %16 : vector<16x128xf32>
    %cst_9 = arith.constant 0.000000e+00 : f32
    %23 = vector.broadcast %cst_9 : f32 to vector<16x128xf32>
    %24 = arith.subf %23, %19 : vector<16x128xf32>
    %25 = arith.mulf %24, %17 : vector<16x128xf32>
    %cst_10 = arith.constant 0.899999976 : f32
    %26 = vector.broadcast %cst_10 : f32 to vector<16x128xf32>
    %27 = arith.mulf %26, %5 : vector<16x128xf32>
    %cst_11 = arith.constant 5.000000e-02 : f32
    %28 = vector.broadcast %cst_11 : f32 to vector<16x128xf32>
    %29 = arith.addf %27, %28 : vector<16x128xf32>
    %30 = arith.subf %22, %25 : vector<16x128xf32>
    %31 = arith.mulf %29, %30 : vector<16x128xf32>
    %32 = arith.addf %25, %31 : vector<16x128xf32>
    %c0_12 = arith.constant 0 : index
    %c0_13 = arith.constant 0 : index
    %33 = vector.load %arg5[%c0_12, %c0_13] : memref<1x128xf32, #tpu.memory_space<vmem>>, vector<1x128xf32>
    %cst_14 = arith.constant dense<0.000000e+00> : vector<128xf32>
    %34 = vector.multi_reduction <add>, %32, %cst_14 [0] : vector<16x128xf32> to vector<128xf32>
    %35 = vector.shape_cast %34 : vector<128xf32> to vector<1x128xf32>
    %36 = arith.addf %33, %35 : vector<1x128xf32>
    %c0_15 = arith.constant 0 : index
    %c0_16 = arith.constant 0 : index
    %37 = vector.load %arg5[%c0_15, %c0_16] : memref<1x128xf32, #tpu.memory_space<vmem>>, vector<1x128xf32>
    tpu.vector_store %arg5[%c0_15, %c0_16], %36 {strides = array<i32>} : memref<1x128xf32, #tpu.memory_space<vmem>>, vector<1x128xf32>,
    %c0_i32_17 = arith.constant 0 : i32
    %38 = arith.cmpi eq, %arg1, %c0_i32_17 : i32
    %39 = arith.extui %38 : i1 to i32
    %c0_i32_18 = arith.constant 0 : i32
    %40 = arith.cmpi ne, %39, %c0_i32_18 : i32
    scf.if %40 {
      %c0_19 = arith.constant 0 : index
      %c0_20 = arith.constant 0 : index
      %41 = vector.load %arg5[%c0_19, %c0_20] : memref<1x128xf32, #tpu.memory_space<vmem>>, vector<1x128xf32>
      %cst_21 = arith.constant 4.8828125E-4 : f32
      %42 = vector.broadcast %cst_21 : f32 to vector<1x128xf32>
      %43 = arith.mulf %41, %42 : vector<1x128xf32>
      %c0_22 = arith.constant 0 : index
      %c0_23 = arith.constant 0 : index
      %c0_24 = arith.constant 0 : index
      %44 = vector.load %arg4[%c0_22, %c0_23, %c0_24] : memref<1x1x128xf32, #tpu.memory_space<vmem>>, vector<1x1x128xf32>
      %45 = vector.shape_cast %44 : vector<1x1x128xf32> to vector<1x128xf32>
      %46 = vector.shape_cast %43 : vector<1x128xf32> to vector<1x1x128xf32>
      tpu.vector_store %arg4[%c0_22, %c0_23, %c0_24], %46 {strides = array<i32>} : memref<1x1x128xf32, #tpu.memory_space<vmem>>, vector<1x1x128xf32>,
    } else {
    }
    return
  }
  func.func @transform_0(%arg0: i32, %arg1: i32) -> (i32, i32) {
    %c1_i32 = arith.constant 1 : i32
    %0 = arith.muli %arg0, %c1_i32 : i32
    %1 = arith.addi %0, %arg1 : i32
    %c0_i32 = arith.constant 0 : i32
    %2 = arith.minsi %1, %c0_i32 : i32
    %c0_i32_0 = arith.constant 0 : i32
    %c0_i32_1 = arith.constant 0 : i32
    return %2, %c0_i32_0 : i32, i32
  }
  func.func @transform_1(%arg0: i32, %arg1: i32) -> (i32, i32) {
    %c1_i32 = arith.constant 1 : i32
    %0 = arith.muli %arg0, %c1_i32 : i32
    %1 = arith.addi %0, %arg1 : i32
    %c0_i32 = arith.constant 0 : i32
    %2 = arith.minsi %1, %c0_i32 : i32
    %c0_i32_0 = arith.constant 0 : i32
    %c0_i32_1 = arith.constant 0 : i32
    return %2, %c0_i32_0 : i32, i32
  }
  func.func @transform_2(%arg0: i32, %arg1: i32) -> (i32, i32, i32) {
    %c0_i32 = arith.constant 0 : i32
    %c0_i32_0 = arith.constant 0 : i32
    %c0_i32_1 = arith.constant 0 : i32
    return %arg0, %c0_i32, %c0_i32_0 : i32, i32, i32
  }
}

</mosaic_0001>

<llo_original>
// kernel: tpu_custom_call.1
$region0: #{tpu_custom_call.1}
  #allocation0 [shape = 'u32[]', space=smem, size = 0x4, offset = 0x4, fixed_abs, tag = 'smem constant byte address 0x4 - core index']
  #allocation1 [shape = 'u32[144,128]{1,0:T(1,128)}', space=vmem, size = 0x12000, scoped, tag = 'internal scratch']
  #allocation2 [shape = 'f32[1,128]{1,0:T(1,128)}', space=vmem, size = 0x200, scoped, tag = 'scratch operand']
  %s0 = inlined_call_operand.hbm [shape: f32[16,128], index: 0, kind: input, shape index: {}]
  %s1 = inlined_call_operand.hbm [shape: bf16[16,128], index: 1, kind: input, shape index: {}]
  %s2 = inlined_call_operand.hbm [shape: f32[1,1,128], index: 2, kind: output, shape index: {}]
  %s3 = sld [smem:[#allocation0]]
  $region34: #{tpu_custom_call.1} parent=0
    _
  %s5 = ssub.s32 1, %s3
  %s6 = scalar_select 0, %s5, %s3
  $region1: #{tpu_custom_call.1} parent=0
    #allocation3 [shape = 'u8[8192]{0}', space=vmem, size = 0x2000, scoped, tag = 'input window, operand 0, single buffered']
    #allocation4 [shape = 's32[1]{0}', space=sflag, size = 0x4, scoped, tag = 'scoped memory for tpu_custom_call.1']
    #allocation5 [shape = 's32[1]{0}', space=sflag, size = 0x4, scoped, tag = 'scoped memory for tpu_custom_call.1']
    #allocation6 [shape = 'u8[4096]{0}', space=vmem, size = 0x1000, scoped, tag = 'input window, operand 1, single buffered']
    #allocation7 [shape = 's32[1]{0}', space=sflag, size = 0x4, scoped, tag = 'scoped memory for tpu_custom_call.1']
    #allocation8 [shape = 'u8[512]{0}', space=vmem, size = 0x400, scoped, tag = 'output window, operand 0, single buffered']
    %7 = vsyncpa [#allocation4], 0
    %8 = vsyncpa [#allocation7], 0
    %9 = vsyncpa [#allocation5], 0
    // Predicated region
    $region2: #{tpu_custom_call.1} parent=1 // pred_check
      _
    $region3: #{tpu_custom_call.1} parent=1 // pred_check_branch
      %11 = sbr.rel (0) target = $region5
    $region4: #{tpu_custom_call.1} parent=1 // pred_region
      %s12 = sadd.s32 0, 0
      %p13 = scmp.lt.s32.totalorder %s12, 0
      %s14 = scalar_select %p13, %s12, 0
      %s15 = smul.u32 2, %s14
      %s17 = ssub.s32 256, 256
      %18 = vsyncadd [#allocation4], %s17
      %s19 = smul.addr %s15, 128
      %s20 = scalar_lea.hbm %s0, %s19
      %s21 = sshll.u32 [#allocation3], 4
      %s22 = int_to_ptr.vmem [resolvable:$true] %s21
      %27 = dma.hbm_to_vmem [thread:$0]  %s20, 256, %s22, [#allocation4], 128, 128, 8
    $region5: #{tpu_custom_call.1} parent=1 // pred_fallthru
      _
    // Predicated region
    $region6: #{tpu_custom_call.1} parent=1 // pred_check
      _
    $region7: #{tpu_custom_call.1} parent=1 // pred_check_branch
      %29 = sbr.rel (0) target = $region9
    $region8: #{tpu_custom_call.1} parent=1 // pred_region
      %s30 = sadd.s32 0, 0
      %p31 = scmp.lt.s32.totalorder %s30, 0
      %s32 = scalar_select %p31, %s30, 0
      %s33 = smul.u32 2, %s32
      %s35 = ssub.s32 128, 128
      %36 = vsyncadd [#allocation7], %s35
      %s37 = smul.addr %s33, 64
      %s38 = scalar_lea.hbm %s1, %s37
      %s39 = sshll.u32 [#allocation6], 4
      %s40 = int_to_ptr.vmem [resolvable:$true] %s39
      %45 = dma.hbm_to_vmem [thread:$0]  %s38, 128, %s40, [#allocation7], 64, 64, 4
    $region9: #{tpu_custom_call.1} parent=1 // pred_fallthru
      _
    // Predicated region
    $region10: #{tpu_custom_call.1} parent=1 // pred_check
      _
    $region11: #{tpu_custom_call.1} parent=1 // pred_check_branch
      %47 = sbr.rel (0) target = $region13
    $region12: #{tpu_custom_call.1} parent=1 // pred_region
      %48 = dma.done [#allocation4], 256
    $region13: #{tpu_custom_call.1} parent=1 // pred_fallthru
      _
    // Predicated region
    $region14: #{tpu_custom_call.1} parent=1 // pred_check
      _
    $region15: #{tpu_custom_call.1} parent=1 // pred_check_branch
      %50 = sbr.rel (0) target = $region17
    $region16: #{tpu_custom_call.1} parent=1 // pred_region
      %51 = dma.done [#allocation7], 128
    $region17: #{tpu_custom_call.1} parent=1 // pred_fallthru
      _
    %s52 = sadd.s32 0, 0
    %p53 = scmp.lt.s32.totalorder %s52, 0
    %s54 = scalar_select %p53, %s52, 0
    %s55 = smul.u32 2, %s54
    %s56 = sadd.s32 0, 0
    %p57 = scmp.lt.s32.totalorder %s56, 0
    %s58 = scalar_select %p57, %s56, 0
    %s59 = smul.u32 2, %s58
    %p60 = scmp.eq.s32.totalorder 0, 0
    // Predicated region
    $region18: #{tpu_custom_call.1} parent=1 // pred_check
      %p61 = pneg %p60
    $region19: #{tpu_custom_call.1} parent=1 // pred_check_branch
      %63 = sbr.rel (%p61) target = $region21
    $region20: #{tpu_custom_call.1} parent=1 // pred_region
      %64 = vst [vmem:[#allocation2] sm:$0x1] 0.0
    $region21: #{tpu_custom_call.1} parent=1 // pred_fallthru
      _
    %v65 = vld [vmem:[#allocation3] sm:$0xff]
    %v66 = vld [vmem:[#allocation3 + $0x8] sm:$0xff]
    %v67 = vld [vmem:[#allocation6] sm:$0xf]
    %v68 = vld [vmem:[#allocation6 + $0x4] sm:$0xf]
    %v69 = vunpack.c.l.bf16 %v67
    %v70 = vunpack.c.l.bf16 %v68
    %v71 = vsub.f32 1.0, %v65
    %v72 = vsub.f32 1.0, %v66
    %v73 = vmax.f32 %v65, 1e-07
    %v74 = vmax.f32 %v66, 1e-07
    %v75 = vmin.f32 %v73, 1.0
    %v76 = vmin.f32 %v74, 1.0
    %v77 = vmax.f32 %v71, 1e-07
    %v78 = vmax.f32 %v72, 1e-07
    %v79 = vmin.f32 %v77, 1.0
    %v80 = vmin.f32 %v78, 1.0
    %v81 = vlog2.pop %v75
    %v82 = vmul.f32 %v81, 0.6931472
    %v83 = vlog2.pop %v76
    %v84 = vmul.f32 %v83, 0.6931472
    %v85 = vlog2.pop %v79
    %v86 = vmul.f32 %v85, 0.6931472
    %v87 = vlog2.pop %v80
    %v88 = vmul.f32 %v87, 0.6931472
    %v89 = vmul.f32 %v79, %v79
    %v90 = vmul.f32 %v80, %v80
    %v91 = vmul.f32 %v75, %v75
    %v92 = vmul.f32 %v76, %v76
    %v93 = vsub.f32 0.0, %v89
    %v94 = vsub.f32 0.0, %v90
    %v95 = vmul.f32 %v93, %v82
    %v96 = vmul.f32 %v94, %v84
    %v97 = vsub.f32 0.0, %v91
    %v98 = vsub.f32 0.0, %v92
    %v99 = vmul.f32 %v97, %v86
    %v100 = vmul.f32 %v98, %v88
    %v101 = vmul.f32 %v69, 0.9
    %v102 = vmul.f32 %v70, 0.9
    %v103 = vadd.f32 %v101, 0.05
    %v104 = vadd.f32 %v102, 0.05
    %v105 = vsub.f32 %v95, %v99
    %v106 = vsub.f32 %v96, %v100
    %v107 = vmul.f32 %v103, %v105
    %v108 = vmul.f32 %v104, %v106
    %v109 = vadd.f32 %v99, %v107
    %v110 = vadd.f32 %v100, %v108
    %v111 = vld [vmem:[#allocation2] sm:$0x1]
    %v112 = vadd.f32 %v109, %v110
    %v113 = vrot.slane %v112, 4
    %v114 = vadd.f32 %v112, %v113
    %v115 = vrot.slane %v114, 2
    %v116 = vadd.f32 %v114, %v115
    %v117 = vrot.slane %v116, 1
    %v118 = vadd.f32 %v116, %v117
    %v119 = vadd.f32 %v111, %v118
    %120 = vst [vmem:[#allocation2] sm:$0x1] %v119
    // Predicated region
    $region22: #{tpu_custom_call.1} parent=1 // pred_check
      %p121 = pneg %p60
    $region23: #{tpu_custom_call.1} parent=1 // pred_check_branch
      %123 = sbr.rel (%p121) target = $region25
    $region24: #{tpu_custom_call.1} parent=1 // pred_region
      %v124 = vld [vmem:[#allocation2] sm:$0x1]
      %v125 = vmul.f32 %v124, 0.00048828125
      %126 = vst [vmem:[#allocation8] sm:$0x1] %v125
    $region25: #{tpu_custom_call.1} parent=1 // pred_fallthru
      _
    // Predicated region
    $region26: #{tpu_custom_call.1} parent=1 // pred_check
      _
    $region27: #{tpu_custom_call.1} parent=1 // pred_check_branch
      %128 = sbr.rel (0) target = $region29
    $region28: #{tpu_custom_call.1} parent=1 // pred_region
      %s130 = ssub.s32 16, 16
      %131 = vsyncadd [#allocation5], %s130
      %s133 = sshll.u32 [#allocation8], 4
      %s134 = int_to_ptr.vmem [resolvable:$true] %s133
      %136 = dma.vmem_to_hbm [thread:$0]  %s134, 16, %s2, [#allocation5]
    $region29: #{tpu_custom_call.1} parent=1 // pred_fallthru
      _
    // Predicated region
    $region30: #{tpu_custom_call.1} parent=1 // pred_check
      _
    $region31: #{tpu_custom_call.1} parent=1 // pred_check_branch
      %138 = sbr.rel (0) target = $region33
    $region32: #{tpu_custom_call.1} parent=1 // pred_region
      %139 = dma.done [#allocation5], 16
    $region33: #{tpu_custom_call.1} parent=1 // pred_fallthru
      _
    %140 = vsyncpa [#allocation4], 1
    %141 = vsyncpa [#allocation7], 1
    %142 = vsyncpa [#allocation5], 1

</llo_original>
